<compile_context>
chip_gen: v5e
topology: v5e:2x2
jax: 0.10.0
libtpu: 0.0.40
codegen_flags: <defaults>
</compile_context>

<pallas_src>
import functools
import numpy as np

import jax
import jax.numpy as jnp
from jax import lax
from jax.experimental import pallas as pl
from jax.experimental.pallas import tpu as pltpu


# -----------------------------------------------------------------------------
# Helpers (plain JAX / numpy glue)
# -----------------------------------------------------------------------------
def _round_up(x: int, m: int) -> int:
    return ((x + m - 1) // m) * m


def adaptive_avg_pool1d_matrix(n_in: int, n_out: int,
                               n_in_padded: int | None = None) -> jnp.ndarray:
    """(n_out, n_in_padded) averaging matrix matching nn.AdaptiveAvgPool1d."""
    if n_in_padded is None:
        n_in_padded = n_in
    P = np.zeros((n_out, n_in_padded), dtype=np.float32)
    for i in range(n_out):
        start = (i * n_in) // n_out
        end = -((-(i + 1) * n_in) // n_out)          # ceil((i+1)*n_in / n_out)
        P[i, start:end] = 1.0 / float(end - start)
    return jnp.asarray(P)


# -----------------------------------------------------------------------------
# Pallas kernel
# -----------------------------------------------------------------------------
def _input_encoder_kernel(x_ref, m_ref, w1_ref, b1_ref, w2_ref, b2_ref, p_ref,
                          o_ref, chunk_ref, cnt_ref, *,
                          stride, r_comb, num_windows, nw_pad,
                          chunks_per_tile, num_s_tiles, pooling_mode):
    s_idx = pl.program_id(1)

    # Per-batch scratch init: keeps padded rows finite (no NaN/Inf garbage can
    # reach the MLP / adaptive pool).  Cheap: nc_alloc x H store once per batch.
    @pl.when(s_idx == 0)
    def _init():
        chunk_ref[...] = jnp.zeros_like(chunk_ref)
        cnt_ref[...] = jnp.zeros_like(cnt_ref)

    x = x_ref[0]                              # (tile_s, H) f32
    m = m_ref[0]                              # (tile_s, 1) f32
    tile_s, hidden = x.shape
    cpt = chunks_per_tile

    # ---- stage 1: per-stride-chunk partial pooling for this S tile ----------
    row_off = pl.multiple_of(s_idx * cpt, cpt)
    if pooling_mode == "max":
        masked = jnp.where(m > 0.0, x, -jnp.inf)               # no extra multiply
        cval = jnp.max(masked.reshape(cpt, stride, hidden), axis=1)    # (cpt, H)
        chunk_ref[pl.ds(row_off, cpt), :] = cval
    else:                                                      # 'avg'
        masked = x * m
        cval = jnp.sum(masked.reshape(cpt, stride, hidden), axis=1)    # (cpt, H)
        ccnt = jnp.sum(m.reshape(cpt, stride, 1), axis=1)               # (cpt, 1)
        chunk_ref[pl.ds(row_off, cpt), :] = cval
        cnt_ref[pl.ds(row_off, cpt), :] = ccnt

    # ---- stage 2 (last S tile of this batch element) ------------------------
    @pl.when(s_idx == num_s_tiles - 1)
    def _finalize():
        # Combine r_comb adjacent chunk rows into per-window pooled values
        # using static shifted slices of the loaded scratch.
        allc = chunk_ref[...]                                  # (nc_alloc, H)
        if pooling_mode == "max":
            pooled = allc[0:nw_pad, :]
            for r in range(1, r_comb):
                pooled = jnp.maximum(pooled, allc[r:r + nw_pad, :])
        else:
            allcnt = cnt_ref[...]                              # (nc_alloc, 1)
            pooled = allc[0:nw_pad, :]
            cnt = allcnt[0:nw_pad, :]
            for r in range(1, r_comb):
                pooled = pooled + allc[r:r + nw_pad, :]
                cnt = cnt + allcnt[r:r + nw_pad, :]
            pooled = pooled / (cnt + 1e-10)

        # Attention MLP: Linear(H, H//2) -> ReLU -> Linear(H//2, 1).
        h = jnp.dot(pooled, w1_ref[...], preferred_element_type=jnp.float32)
        h = jnp.maximum(h + b1_ref[...], 0.0)                  # (nw_pad, H//2)
        # Second linear as VPU multiply + lane reduce (avoids a lane-width-1
        # MXU matmul and masked partial stores); b2 is a scalar in SMEM.
        scores = jnp.sum(h * w2_ref[...], axis=-1, keepdims=True) + b2_ref[0, 0]

        # Mask padded window rows out of the softmax.
        if nw_pad != num_windows:
            rows = lax.broadcasted_iota(jnp.int32, (nw_pad, 1), 0)
            scores = jnp.where(rows < num_windows, scores, -jnp.inf)

        scores = scores - jnp.max(scores, axis=0, keepdims=True)
        e = jnp.exp(scores)
        weights = e * pl.reciprocal(jnp.sum(e, axis=0, keepdims=True),
                                    approx=False)

        # Padded rows: pooled == 0 (scratch zero-init) and weights == 0
        # (exp(-inf)), and the adaptive-pool matrix has zero columns there.
        weighted = pooled * weights                            # (nw_pad, H)

        # Adaptive average pooling over the window axis as a (T, NW_pad) matmul.
        comp = jnp.dot(p_ref[...], weighted,
                       preferred_element_type=jnp.float32)     # (T, H)
        o_ref[0] = comp.astype(o_ref.dtype)


# -----------------------------------------------------------------------------
# Wrapper
# -----------------------------------------------------------------------------
def input_encoder_forward(hidden_states, attention_mask, params, *,
                          target_length, window_size=128, stride=64,
                          pooling_mode="max",
                          x_tile_bytes=2 * 1024 * 1024,
                          vmem_limit_bytes=None):
    """hidden_states: (B, S, H) f32; attention_mask: (B, S) or None."""
    B, S, H = hidden_states.shape
    dtype = hidden_states.dtype

    if attention_mask is None:
        attention_mask = jnp.ones((B, S), dtype=dtype)

    # Effective geometry (PyTorch: if S < window_size there is one window that
    # simply covers the whole sequence).
    if S < window_size:
        window_size_eff, stride_eff = S, S
    else:
        window_size_eff, stride_eff = window_size, stride
    # TODO(synk): window_size % stride != 0 needs a per-window fallback path.
    assert window_size_eff % stride_eff == 0, \
        "vectorized pooling path requires window_size % stride == 0"

    num_windows = max(1, (S - window_size) // stride + 1)
    r_comb = window_size_eff // stride_eff                # chunks per window
    s_used = (num_windows - 1) * stride_eff + window_size_eff

    # Trailing tokens past the last full window are dropped (matches the
    # PyTorch sliding-window loop semantics).
    x = hidden_states[:, :s_used, :]
    mask = attention_mask[:, :s_used].astype(dtype).reshape(B, s_used, 1)

    num_chunks = s_used // stride_eff                     # = num_windows + r_comb - 1

    # Choose an S tile: a whole number of stride-chunks dividing num_chunks,
    # double-buffered x tile within budget, sublane-aligned (or full sequence).
    aligned = [d for d in range(1, num_chunks + 1)
               if num_chunks % d == 0
               and ((d * stride_eff) % 8 == 0 or d * stride_eff == s_used)]
    within = [d for d in aligned
              if d * stride_eff * H * x.dtype.itemsize <= x_tile_bytes]
    chunks_per_tile = max(within) if within else min(aligned)
    tile_s = chunks_per_tile * stride_eff
    num_s_tiles = num_chunks // chunks_per_tile

    nw_pad = _round_up(num_windows, 8)
    nc_alloc = _round_up(max(num_chunks, nw_pad + r_comb - 1), 8)

    # Parameters: attention = Linear(H, H//2) -> ReLU -> Linear(H//2, 1).
    w1 = params["w1"]                                     # (H, H//2)
    hh = w1.shape[1]
    b1 = params["b1"].reshape(1, hh)
    w2_row = params["w2"].reshape(1, hh)                  # (1, H//2)
    b2 = jnp.asarray(params["b2"], dtype=jnp.float32).reshape(1, 1)

    # Adaptive avg-pool coefficients, zero-padded to nw_pad columns.
    pool_mat = adaptive_avg_pool1d_matrix(num_windows, target_length,
                                          n_in_padded=nw_pad)  # (T, nw_pad)

    kernel = functools.partial(
        _input_encoder_kernel,
        stride=stride_eff,
        r_comb=r_comb,
        num_windows=num_windows,
        nw_pad=nw_pad,
        chunks_per_tile=chunks_per_tile,
        num_s_tiles=num_s_tiles,
        pooling_mode=pooling_mode,
    )

    out = pl.pallas_call(
        kernel,
        out_shape=jax.ShapeDtypeStruct((B, target_length, H), dtype),
        grid=(B, num_s_tiles),
        in_specs=[
            pl.BlockSpec((1, tile_s, H), lambda b, s: (b, s, 0)),        # x
            pl.BlockSpec((1, tile_s, 1), lambda b, s: (b, s, 0)),        # mask (S,1)
            pl.BlockSpec((H, hh), lambda b, s: (0, 0)),                  # w1
            pl.BlockSpec((1, hh), lambda b, s: (0, 0)),                  # b1
            pl.BlockSpec((1, hh), lambda b, s: (0, 0)),                  # w2 (row)
            pl.BlockSpec(memory_space=pltpu.MemorySpace.SMEM),           # b2 scalar
            pl.BlockSpec((target_length, nw_pad), lambda b, s: (0, 0)),  # P
        ],
        out_specs=pl.BlockSpec((1, target_length, H), lambda b, s: (b, 0, 0)),
        scratch_shapes=[
            pltpu.VMEM((nc_alloc, H), jnp.float32),   # per-chunk max / sum
            pltpu.VMEM((nc_alloc, 1), jnp.float32),   # per-chunk valid counts (avg)
        ],
        compiler_params=pltpu.CompilerParams(
            dimension_semantics=("parallel", "arbitrary"),
            vmem_limit_bytes=vmem_limit_bytes),
    )(x, mask, w1, b1, w2_row, b2, pool_mat)
    return out


# -----------------------------------------------------------------------------
# Pure-JAX reference (for a sanity check)
# -----------------------------------------------------------------------------
def input_encoder_reference(hidden_states, attention_mask, params, *,
                            target_length, window_size, stride,
                            pooling_mode="max"):
    B, S, H = hidden_states.shape
    num_windows = max(1, (S - window_size) // stride + 1)
    if attention_mask is None:
        attention_mask = jnp.ones((B, S), dtype=hidden_states.dtype)

    pooled = []
    for i in range(num_windows):
        s = i * stride
        win = hidden_states[:, s:s + window_size, :]
        wm = attention_mask[:, s:s + window_size]
        masked = win * wm[:, :, None]
        if pooling_mode == "max":
            masked = jnp.where(wm[:, :, None] > 0, masked, -jnp.inf)
            pooled.append(jnp.max(masked, axis=1))
        else:
            valid = jnp.sum(wm, axis=1, keepdims=True)
            pooled.append(jnp.sum(masked, axis=1) / (valid + 1e-10))
    pooled = jnp.stack(pooled, axis=1)                       # (B, NW, H)

    hi = lax.Precision.HIGHEST
    h = jnp.maximum(
        jnp.einsum("bnh,hk->bnk", pooled, params["w1"], precision=hi)
        + params["b1"], 0.0)
    scores = jnp.einsum("bnk,ko->bno", h, params["w2"], precision=hi) + params["b2"]
    weights = jax.nn.softmax(scores, axis=1)
    weighted = pooled * weights                              # (B, NW, H)

    P = adaptive_avg_pool1d_matrix(num_windows, target_length)  # (T, NW)
    return jnp.einsum("tn,bnh->bth", P, weighted, precision=hi)


# -----------------------------------------------------------------------------
if __name__ == "__main__":
    # Small, module-consistent shapes.
    B, S, H = 2, 32, 32
    WINDOW, STRIDE = 8, 4
    TARGET = 4

    key = jax.random.PRNGKey(0)
    k_x, k_w1, k_b1, k_w2, k_b2 = jax.random.split(key, 5)

    hidden_states = jax.random.normal(k_x, (B, S, H), dtype=jnp.float32)
    # Mask: last 3 tokens of batch element 1 are padding.
    attention_mask = jnp.ones((B, S), dtype=jnp.float32)
    attention_mask = attention_mask.at[1, -3:].set(0.0)

    params = {
        "w1": 0.05 * jax.random.normal(k_w1, (H, H // 2), dtype=jnp.float32),
        "b1": 0.01 * jax.random.normal(k_b1, (1, H // 2), dtype=jnp.float32),
        "w2": 0.05 * jax.random.normal(k_w2, (H // 2, 1), dtype=jnp.float32),
        "b2": 0.01 * jax.random.normal(k_b2, (1, 1), dtype=jnp.float32),
    }

    for mode in ("max", "avg"):
        out = input_encoder_forward(
            hidden_states, attention_mask, params,
            target_length=TARGET, window_size=WINDOW, stride=STRIDE,
            pooling_mode=mode)
        out = jax.block_until_ready(out)

        ref = input_encoder_reference(
            hidden_states, attention_mask, params,
            target_length=TARGET, window_size=WINDOW, stride=STRIDE,
            pooling_mode=mode)

        assert out.shape == (B, TARGET, H), out.shape
        # Tolerance accommodates possible MXU pass-count (bf16 vs f32)
        # differences between the kernel matmuls and the HIGHEST-precision
        # reference; a semantic bug would be orders of magnitude larger.
        np.testing.assert_allclose(np.asarray(out), np.asarray(ref),
                                   rtol=3e-3, atol=2e-3)

    print("KERNEL_OK")
</pallas_src>

<mosaic_0001>
module attributes {stable_mosaic.version = 11 : i64} {
  func.func @_input_encoder_kernel(%arg0: i32, %arg1: i32, %arg2: memref<1x32x32xf32, #tpu.memory_space<vmem>>, %arg3: memref<1x32x1xf32, #tpu.memory_space<vmem>>, %arg4: memref<32x16xf32, #tpu.memory_space<vmem>>, %arg5: memref<1x16xf32, #tpu.memory_space<vmem>>, %arg6: memref<1x16xf32, #tpu.memory_space<vmem>>, %arg7: memref<1x1xf32, #tpu.memory_space<smem>>, %arg8: memref<4x8xf32, #tpu.memory_space<vmem>>, %arg9: memref<1x4x32xf32, #tpu.memory_space<vmem>>, %arg10: memref<16x32xf32, #tpu.memory_space<vmem>>, %arg11: memref<16x1xf32, #tpu.memory_space<vmem>>) attributes {dimension_semantics = [#tpu.dimension_semantics<parallel>, #tpu.dimension_semantics<arbitrary>], iteration_bounds = array<i64: 2, 1>, scalar_prefetch = 0 : i64, scratch_operands = 2 : i64, tpu.core_type = #tpu.core_type<tc>, window_params = [{transform_indices = @transform_0, window_bounds = array<i64: 1, 32, 32>}, {transform_indices = @transform_1, window_bounds = array<i64: 1, 32, 1>}, {pipeline_mode = #tpu.pipeline_mode<synchronous>, transform_indices = @transform_2, window_bounds = array<i64: 32, 16>}, {pipeline_mode = #tpu.pipeline_mode<synchronous>, transform_indices = @transform_3, window_bounds = array<i64: 1, 16>}, {pipeline_mode = #tpu.pipeline_mode<synchronous>, transform_indices = @transform_4, window_bounds = array<i64: 1, 16>}, {transform_indices = @transform_5, window_bounds = array<i64: 1, 1>}, {pipeline_mode = #tpu.pipeline_mode<synchronous>, transform_indices = @transform_6, window_bounds = array<i64: 4, 8>}, {transform_indices = @transform_7, window_bounds = array<i64: 1, 4, 32>}]} {
    %c0_i32 = arith.constant 0 : i32
    %0 = arith.cmpi eq, %arg1, %c0_i32 : i32
    %1 = arith.extui %0 : i1 to i32
    %c0_i32_0 = arith.constant 0 : i32
    %2 = arith.cmpi ne, %1, %c0_i32_0 : i32
    scf.if %2 {
      %cst_11 = arith.constant 0.000000e+00 : f32
      %22 = vector.broadcast %cst_11 : f32 to vector<16x32xf32>
      %c0_12 = arith.constant 0 : index
      %c0_13 = arith.constant 0 : index
      %23 = vector.load %arg10[%c0_12, %c0_13] : memref<16x32xf32, #tpu.memory_space<vmem>>, vector<16x32xf32>
      tpu.vector_store %arg10[%c0_12, %c0_13], %22 {strides = array<i32>} : memref<16x32xf32, #tpu.memory_space<vmem>>, vector<16x32xf32>,
      %cst_14 = arith.constant 0.000000e+00 : f32
      %24 = vector.broadcast %cst_14 : f32 to vector<16x1xf32>
      %c0_15 = arith.constant 0 : index
      %c0_16 = arith.constant 0 : index
      %25 = vector.load %arg11[%c0_15, %c0_16] : memref<16x1xf32, #tpu.memory_space<vmem>>, vector<16x1xf32>
      tpu.vector_store %arg11[%c0_15, %c0_16], %24 {strides = array<i32>} : memref<16x1xf32, #tpu.memory_space<vmem>>, vector<16x1xf32>,
    } else {
    }
    %c0 = arith.constant 0 : index
    %c0_1 = arith.constant 0 : index
    %c0_2 = arith.constant 0 : index
    %3 = vector.load %arg2[%c0, %c0_1, %c0_2] : memref<1x32x32xf32, #tpu.memory_space<vmem>>, vector<1x32x32xf32>
    %4 = vector.shape_cast %3 : vector<1x32x32xf32> to vector<32x32xf32>
    %c0_3 = arith.constant 0 : index
    %c0_4 = arith.constant 0 : index
    %c0_5 = arith.constant 0 : index
    %5 = vector.load %arg3[%c0_3, %c0_4, %c0_5] : memref<1x32x1xf32, #tpu.memory_space<vmem>>, vector<1x32x1xf32>
    %6 = vector.shape_cast %5 : vector<1x32x1xf32> to vector<32x1xf32>
    %c8_i32 = arith.constant 8 : i32
    %7 = arith.muli %arg1, %c8_i32 : i32
    %8 = tpu.assume_multiple %7, 8 : i32
    %cst = arith.constant 0.000000e+00 : f32
    %9 = vector.broadcast %cst : f32 to vector<32x1xf32>
    %10 = arith.cmpf ogt, %6, %9 : vector<32x1xf32>
    %cst_6 = arith.constant 0xFF800000 : f32
    %11 = vector.shape_cast %10 : vector<32x1xi1> to vector<32x1xi1>
    %12 = vector.broadcast %11 : vector<32x1xi1> to vector<32x32xi1>
    %13 = vector.broadcast %cst_6 : f32 to vector<32x32xf32>
    %14 = arith.select %12, %4, %13 : vector<32x32xi1>, vector<32x32xf32>
    %15 = vector.shape_cast %14 : vector<32x32xf32> to vector<8x4x32xf32>
    %cst_7 = arith.constant dense<0xFF800000> : vector<8x32xf32>
    %16 = vector.multi_reduction <maximumf>, %15, %cst_7 [1] : vector<8x4x32xf32> to vector<8x32xf32>
    %17 = arith.index_cast %8 : i32 to index
    %c0_8 = arith.constant 0 : index
    %18 = vector.load %arg10[%17, %c0_8] : memref<16x32xf32, #tpu.memory_space<vmem>>, vector<8x32xf32>
    tpu.vector_store %arg10[%17, %c0_8], %16 {strides = array<i32>} : memref<16x32xf32, #tpu.memory_space<vmem>>, vector<8x32xf32>,
    %c0_i32_9 = arith.constant 0 : i32
    %19 = arith.cmpi eq, %arg1, %c0_i32_9 : i32
    %20 = arith.extui %19 : i1 to i32
    %c0_i32_10 = arith.constant 0 : i32
    %21 = arith.cmpi ne, %20, %c0_i32_10 : i32
    scf.if %21 {
      %c0_11 = arith.constant 0 : index
      %c0_12 = arith.constant 0 : index
      %22 = vector.load %arg10[%c0_11, %c0_12] : memref<16x32xf32, #tpu.memory_space<vmem>>, vector<16x32xf32>
      %23 = vector.extract_strided_slice %22 {offsets = [0, 0], sizes = [8, 32], strides = [1, 1]} : vector<16x32xf32> to vector<8x32xf32>
      %24 = vector.extract_strided_slice %22 {offsets = [1, 0], sizes = [8, 32], strides = [1, 1]} : vector<16x32xf32> to vector<8x32xf32>
      %25 = arith.maximumf %23, %24 : vector<8x32xf32>
      %c0_13 = arith.constant 0 : index
      %c0_14 = arith.constant 0 : index
      %26 = vector.load %arg4[%c0_13, %c0_14] : memref<32x16xf32, #tpu.memory_space<vmem>>, vector<32x16xf32>
      %cst_15 = arith.constant dense<0.000000e+00> : vector<8x16xf32>
      %27 = tpu.matmul %25, %26, %cst_15 {dimension_numbers = #tpu.dot_dimension_numbers<[1], [0], [0], [1], [0, 0, 1, 1], [], []>} : vector<8x32xf32>, vector<32x16xf32>, vector<8x16xf32> -> vector<8x16xf32>
      %c0_16 = arith.constant 0 : index
      %c0_17 = arith.constant 0 : index
      %28 = vector.load %arg5[%c0_16, %c0_17] : memref<1x16xf32, #tpu.memory_space<vmem>>, vector<1x16xf32>
      %29 = vector.broadcast %28 : vector<1x16xf32> to vector<8x16xf32>
      %30 = arith.addf %27, %29 : vector<8x16xf32>
      %cst_18 = arith.constant 0.000000e+00 : f32
      %31 = vector.broadcast %cst_18 : f32 to vector<8x16xf32>
      %32 = arith.maximumf %30, %31 : vector<8x16xf32>
      %c0_19 = arith.constant 0 : index
      %c0_20 = arith.constant 0 : index
      %33 = vector.load %arg6[%c0_19, %c0_20] : memref<1x16xf32, #tpu.memory_space<vmem>>, vector<1x16xf32>
      %34 = vector.broadcast %33 : vector<1x16xf32> to vector<8x16xf32>
      %35 = arith.mulf %32, %34 : vector<8x16xf32>
      %cst_21 = arith.constant dense<0.000000e+00> : vector<8xf32>
      %36 = vector.multi_reduction <add>, %35, %cst_21 [1] : vector<8x16xf32> to vector<8xf32>
      %37 = vector.shape_cast %36 : vector<8xf32> to vector<8x1xf32>
      %c0_22 = arith.constant 0 : index
      %c0_23 = arith.constant 0 : index
      %38 = memref.load %arg7[%c0_22, %c0_23] : memref<1x1xf32, #tpu.memory_space<smem>>
      %39 = vector.broadcast %38 : f32 to vector<8x1xf32>
      %40 = arith.addf %37, %39 : vector<8x1xf32>
      %41 = tpu.iota {dimensions = array<i32: 0>} : vector<8x1xi32>
      %c7_i32 = arith.constant 7 : i32
      %42 = vector.broadcast %c7_i32 : i32 to vector<8x1xi32>
      %43 = arith.cmpi slt, %41, %42 : vector<8x1xi32>
      %cst_24 = arith.constant 0xFF800000 : f32
      %44 = vector.broadcast %cst_24 : f32 to vector<8x1xf32>
      %45 = arith.select %43, %40, %44 : vector<8x1xi1>, vector<8x1xf32>
      %cst_25 = arith.constant dense<0xFF800000> : vector<1xf32>
      %46 = vector.multi_reduction <maximumf>, %45, %cst_25 [0] : vector<8x1xf32> to vector<1xf32>
      %47 = vector.shape_cast %46 : vector<1xf32> to vector<1x1xf32>
      %48 = vector.broadcast %47 : vector<1x1xf32> to vector<8x1xf32>
      %49 = arith.subf %45, %48 : vector<8x1xf32>
      %50 = math.exp %49 : vector<8x1xf32>
      %cst_26 = arith.constant dense<0.000000e+00> : vector<1xf32>
      %51 = vector.multi_reduction <add>, %50, %cst_26 [0] : vector<8x1xf32> to vector<1xf32>
      %52 = vector.shape_cast %51 : vector<1xf32> to vector<1x1xf32>
      %53 = tpu.reciprocal %52 : vector<1x1xf32> -> vector<1x1xf32>
      %54 = vector.broadcast %53 : vector<1x1xf32> to vector<8x1xf32>
      %55 = arith.mulf %50, %54 : vector<8x1xf32>
      %56 = vector.broadcast %55 : vector<8x1xf32> to vector<8x32xf32>
      %57 = arith.mulf %25, %56 : vector<8x32xf32>
      %c0_27 = arith.constant 0 : index
      %c0_28 = arith.constant 0 : index
      %58 = vector.load %arg8[%c0_27, %c0_28] : memref<4x8xf32, #tpu.memory_space<vmem>>, vector<4x8xf32>
      %cst_29 = arith.constant dense<0.000000e+00> : vector<4x32xf32>
      %59 = tpu.matmul %58, %57, %cst_29 {dimension_numbers = #tpu.dot_dimension_numbers<[1], [0], [0], [1], [0, 0, 1, 1], [], []>} : vector<4x8xf32>, vector<8x32xf32>, vector<4x32xf32> -> vector<4x32xf32>
      %c0_30 = arith.constant 0 : index
      %c0_31 = arith.constant 0 : index
      %c0_32 = arith.constant 0 : index
      %60 = vector.load %arg9[%c0_30, %c0_31, %c0_32] : memref<1x4x32xf32, #tpu.memory_space<vmem>>, vector<1x4x32xf32>
      %61 = vector.shape_cast %60 : vector<1x4x32xf32> to vector<4x32xf32>
      %62 = vector.shape_cast %59 : vector<4x32xf32> to vector<1x4x32xf32>
      tpu.vector_store %arg9[%c0_30, %c0_31, %c0_32], %62 {strides = array<i32>} : memref<1x4x32xf32, #tpu.memory_space<vmem>>, vector<1x4x32xf32>,
    } else {
    }
    return
  }
  func.func @transform_0(%arg0: i32, %arg1: i32) -> (i32, i32, i32) {
    %c0_i32 = arith.constant 0 : i32
    %c0_i32_0 = arith.constant 0 : i32
    return %arg0, %arg1, %c0_i32 : i32, i32, i32
  }
  func.func @transform_1(%arg0: i32, %arg1: i32) -> (i32, i32, i32) {
    %c0_i32 = arith.constant 0 : i32
    %c0_i32_0 = arith.constant 0 : i32
    return %arg0, %arg1, %c0_i32 : i32, i32, i32
  }
  func.func @transform_2(%arg0: i32, %arg1: i32) -> (i32, i32) {
    %c0_i32 = arith.constant 0 : i32
    %c0_i32_0 = arith.constant 0 : i32
    %c0_i32_1 = arith.constant 0 : i32
    return %c0_i32, %c0_i32_0 : i32, i32
  }
  func.func @transform_3(%arg0: i32, %arg1: i32) -> (i32, i32) {
    %c0_i32 = arith.constant 0 : i32
    %c0_i32_0 = arith.constant 0 : i32
    %c0_i32_1 = arith.constant 0 : i32
    return %c0_i32, %c0_i32_0 : i32, i32
  }
  func.func @transform_4(%arg0: i32, %arg1: i32) -> (i32, i32) {
    %c0_i32 = arith.constant 0 : i32
    %c0_i32_0 = arith.constant 0 : i32
    %c0_i32_1 = arith.constant 0 : i32
    return %c0_i32, %c0_i32_0 : i32, i32
  }
  func.func @transform_5(%arg0: i32, %arg1: i32) -> (i32, i32) {
    %c0_i32 = arith.constant 0 : i32
    %c0_i32_0 = arith.constant 0 : i32
    %c0_i32_1 = arith.constant 0 : i32
    return %c0_i32, %c0_i32_0 : i32, i32
  }
  func.func @transform_6(%arg0: i32, %arg1: i32) -> (i32, i32) {
    %c0_i32 = arith.constant 0 : i32
    %c0_i32_0 = arith.constant 0 : i32
    %c0_i32_1 = arith.constant 0 : i32
    return %c0_i32, %c0_i32_0 : i32, i32
  }
  func.func @transform_7(%arg0: i32, %arg1: i32) -> (i32, i32, i32) {
    %c0_i32 = arith.constant 0 : i32
    %c0_i32_0 = arith.constant 0 : i32
    %c0_i32_1 = arith.constant 0 : i32
    return %arg0, %c0_i32, %c0_i32_0 : i32, i32, i32
  }
}

</mosaic_0001>

<llo_original>
// kernel: tpu_custom_call.1
$region0: #{tpu_custom_call.1}
  #allocation0 [shape = 'u32[]', space=smem, size = 0x4, offset = 0x4, fixed_abs, tag = 'smem constant byte address 0x4 - core index']
  #allocation1 [shape = 'u32[72,128]{1,0:T(1,128)}', space=vmem, size = 0x9000, scoped, tag = 'internal scratch']
  #allocation2 [shape = 'f32[16,32]{1,0:T(8,128)}', space=vmem, size = 0x2000, scoped, tag = 'scratch operand']
  #allocation3 [shape = 'f32[16,1]{1,0:T(8,128)}', space=vmem, size = 0x2000, scoped, tag = 'scratch operand']
  #allocation4 [shape = 'f32[1,1]{1,0:T(1,128)S(6)}', space=smem, size = 0x200, scoped, tag = 'scoped memory for tpu_custom_call.1']
  %s0 = inlined_call_operand.vmem [shape: f32[2,32,32], index: 0, kind: input, shape index: {}]
  %s1 = inlined_call_operand.vmem [shape: f32[2,32,1], index: 1, kind: input, shape index: {}]
  %s2 = inlined_call_operand.vmem [shape: f32[32,16], index: 2, kind: input, shape index: {}]
  %s3 = inlined_call_operand.vmem [shape: f32[1,16], index: 3, kind: input, shape index: {}]
  %s4 = inlined_call_operand.vmem [shape: f32[1,16], index: 4, kind: input, shape index: {}]
  %s5 = inlined_call_operand.<no memory space> [shape: f32[1,1], index: 5, kind: input, shape index: {}]
  %s6 = inlined_call_operand.vmem [shape: f32[4,8], index: 6, kind: input, shape index: {}]
  %s7 = inlined_call_operand.hbm [shape: f32[2,4,32], index: 7, kind: output, shape index: {}]
  %s8 = sld [smem:[#allocation0]]
  $region69: #{tpu_custom_call.1} parent=0
    _
  %s10 = ssub.s32 1, %s8
  %s11 = scalar_select 0, %s10, %s8
  %12 = sst [smem:[#allocation4]] %s5
  $region1: #{tpu_custom_call.1} parent=0
    #allocation5 [shape = 'u8[4096]{0}', space=vmem, size = 0x1000, scoped, tag = 'output window, operand 0']
    #allocation6 [shape = 's32[2]{0}', space=sflag, size = 0x8, scoped, tag = 'scoped memory for tpu_custom_call.1']
    %13 = vsyncpa [#allocation6], 0
    %s14 = scalar_lea.sflag [#allocation6], 1
    %15 = vsyncpa %s14, 0
    loop: start=0, step=1, limit=4
    $region2: #{tpu_custom_call.1} parent=1 // loop_pre_header
      _
    $region3: #{tpu_custom_call.1} parent=1 // loop_header
      %s17 = sphi 0, %s21
      %p18 = scmp.ge.s32.totalorder %s17, 4
      %s24 = sphi 0, %s36
      %s25 = sphi 0, %s32
      %s26 = sphi 0, %s24
      %s27 = sphi 0, %s25
      %s28 = sphi 0, %s26
      %s29 = sphi 0, %s27
      %s41 = sphi 0, %s43
      %s44 = sphi 0, %s41
      %s45 = sphi 0, %s44
      %s61 = sphi 0, %s45
      %s69 = sphi 0, %s71
      %s72 = sphi 0, %s69
      %s73 = sphi 0, %s72
      %s89 = sphi 0, %s73
      %s93 = sphi 0, %s93
      %s95 = sphi 0, %s93
      %s96 = sphi 0, %s95
      %s110 = sphi 0, %s96
      %s114 = sphi 0, %s114
      %s116 = sphi 0, %s114
      %s117 = sphi 0, %s116
      %s131 = sphi 0, %s117
      %s135 = sphi 0, %s135
      %s137 = sphi 0, %s135
      %s138 = sphi 0, %s137
      %s152 = sphi 0, %s138
      %s156 = sphi 0, %s156
      %s158 = sphi 0, %s156
      %s159 = sphi 0, %s158
      %s173 = sphi 0, %s159
      %s177 = sphi 0, %s177
      %s179 = sphi 0, %s177
      %s180 = sphi 0, %s179
      %s194 = sphi 0, %s180
      %s200 = sphi 0, %s202
      %s203 = sphi 0, %s200
      %s204 = sphi 0, %s203
      %s220 = sphi 0, %s204
    $region4: #{tpu_custom_call.1} parent=1 // loop_header_branch
      %20 = sbr.rel (%p18) target = $region8
    $region5: #{tpu_custom_call.1} parent=1 // loop_body
      %s22 = ssub.s32 %s17, 1
      %s23 = ssub.s32 %s17, 2
      %s30 = sadd.s32 1, %s25
      %p31 = scmp.ge.s32.totalorder %s30, 1
      %s32 = scalar_select %p31, 0, %s30
      %s33 = sadd.s32 1, %s24
      %s34 = scalar_select %p31, %s33, %s24
      %p35 = scmp.ge.s32.totalorder %s34, 2
      %s36 = scalar_select %p35, 0, %s34
      %s37 = ssub.s32 %s24, %s36
      %s38 = ssub.s32 %s25, %s32
      %s39 = sor.u32 %s37, %s38
      %p40 = scmp.eq.s32.totalorder %s39, 0
      %s42 = sadd.s32 %s41, 1
      %s43 = scalar_select %p40, %s41, %s42
      %p46 = pneg %p40
      %p47 = scmp.eq.s32.totalorder %s17, 1
      %p48 = por %p46, %p47
      %p49 = scmp.ne.s32.totalorder %s41, %s44
      %p50 = scmp.eq.s32.totalorder %s17, 0
      %p51 = por %p49, %p50
      %p52 = scmp.ne.s32.totalorder %s41, %s44
      %p53 = scmp.eq.s32.totalorder %s22, 1
      %p54 = por %p52, %p53
      %p55 = scmp.ne.s32.totalorder %s44, %s45
      %p56 = scmp.eq.s32.totalorder %s22, 0
      %p57 = por %p55, %p56
      %p58 = scmp.ne.s32.totalorder %s44, %s45
      %p59 = scmp.eq.s32.totalorder %s23, 1
      %p60 = por %p58, %p59
      %p62 = scmp.ne.s32.totalorder %s45, %s61
      %p63 = scmp.eq.s32.totalorder %s23, 0
      %p64 = por %p62, %p63
      %s65 = ssub.s32 %s24, %s36
      %s66 = ssub.s32 %s25, %s32
      %s67 = sor.u32 %s65, %s66
      %p68 = scmp.eq.s32.totalorder %s67, 0
      %s70 = sadd.s32 %s69, 1
      %s71 = scalar_select %p68, %s69, %s70
      %p74 = pneg %p68
      %p75 = scmp.eq.s32.totalorder %s17, 1
      %p76 = por %p74, %p75
      %p77 = scmp.ne.s32.totalorder %s69, %s72
      %p78 = scmp.eq.s32.totalorder %s17, 0
      %p79 = por %p77, %p78
      %p80 = scmp.ne.s32.totalorder %s69, %s72
      %p81 = scmp.eq.s32.totalorder %s22, 1
      %p82 = por %p80, %p81
      %p83 = scmp.ne.s32.totalorder %s72, %s73
      %p84 = scmp.eq.s32.totalorder %s22, 0
      %p85 = por %p83, %p84
      %p86 = scmp.ne.s32.totalorder %s72, %s73
      %p87 = scmp.eq.s32.totalorder %s23, 1
      %p88 = por %p86, %p87
      %p90 = scmp.ne.s32.totalorder %s73, %s89
      %p91 = scmp.eq.s32.totalorder %s23, 0
      %p92 = por %p90, %p91
      %s94 = sadd.s32 %s93, 1
      %p97 = scmp.eq.s32.totalorder %s17, 1
      %p98 = scmp.ne.s32.totalorder %s93, %s95
      %p99 = scmp.eq.s32.totalorder %s17, 0
      %p100 = por %p98, %p99
      %p101 = scmp.ne.s32.totalorder %s93, %s95
      %p102 = scmp.eq.s32.totalorder %s22, 1
      %p103 = por %p101, %p102
      %p104 = scmp.ne.s32.totalorder %s95, %s96
      %p105 = scmp.eq.s32.totalorder %s22, 0
      %p106 = por %p104, %p105
      %p107 = scmp.ne.s32.totalorder %s95, %s96
      %p108 = scmp.eq.s32.totalorder %s23, 1
      %p109 = por %p107, %p108
      %p111 = scmp.ne.s32.totalorder %s96, %s110
      %p112 = scmp.eq.s32.totalorder %s23, 0
      %p113 = por %p111, %p112
      %s115 = sadd.s32 %s114, 1
      %p118 = scmp.eq.s32.totalorder %s17, 1
      %p119 = scmp.ne.s32.totalorder %s114, %s116
      %p120 = scmp.eq.s32.totalorder %s17, 0
      %p121 = por %p119, %p120
      %p122 = scmp.ne.s32.totalorder %s114, %s116
      %p123 = scmp.eq.s32.totalorder %s22, 1
      %p124 = por %p122, %p123
      %p125 = scmp.ne.s32.totalorder %s116, %s117
      %p126 = scmp.eq.s32.totalorder %s22, 0
      %p127 = por %p125, %p126
      %p128 = scmp.ne.s32.totalorder %s116, %s117
      %p129 = scmp.eq.s32.totalorder %s23, 1
      %p130 = por %p128, %p129
      %p132 = scmp.ne.s32.totalorder %s117, %s131
      %p133 = scmp.eq.s32.totalorder %s23, 0
      %p134 = por %p132, %p133
      %s136 = sadd.s32 %s135, 1
      %p139 = scmp.eq.s32.totalorder %s17, 1
      %p140 = scmp.ne.s32.totalorder %s135, %s137
      %p141 = scmp.eq.s32.totalorder %s17, 0
      %p142 = por %p140, %p141
      %p143 = scmp.ne.s32.totalorder %s135, %s137
      %p144 = scmp.eq.s32.totalorder %s22, 1
      %p145 = por %p143, %p144
      %p146 = scmp.ne.s32.totalorder %s137, %s138
      %p147 = scmp.eq.s32.totalorder %s22, 0
      %p148 = por %p146, %p147
      %p149 = scmp.ne.s32.totalorder %s137, %s138
      %p150 = scmp.eq.s32.totalorder %s23, 1
      %p151 = por %p149, %p150
      %p153 = scmp.ne.s32.totalorder %s138, %s152
      %p154 = scmp.eq.s32.totalorder %s23, 0
      %p155 = por %p153, %p154
      %s157 = sadd.s32 %s156, 1
      %p160 = scmp.eq.s32.totalorder %s17, 1
      %p161 = scmp.ne.s32.totalorder %s156, %s158
      %p162 = scmp.eq.s32.totalorder %s17, 0
      %p163 = por %p161, %p162
      %p164 = scmp.ne.s32.totalorder %s156, %s158
      %p165 = scmp.eq.s32.totalorder %s22, 1
      %p166 = por %p164, %p165
      %p167 = scmp.ne.s32.totalorder %s158, %s159
      %p168 = scmp.eq.s32.totalorder %s22, 0
      %p169 = por %p167, %p168
      %p170 = scmp.ne.s32.totalorder %s158, %s159
      %p171 = scmp.eq.s32.totalorder %s23, 1
      %p172 = por %p170, %p171
      %p174 = scmp.ne.s32.totalorder %s159, %s173
      %p175 = scmp.eq.s32.totalorder %s23, 0
      %p176 = por %p174, %p175
      %s178 = sadd.s32 %s177, 1
      %p181 = scmp.eq.s32.totalorder %s17, 1
      %p182 = scmp.ne.s32.totalorder %s177, %s179
      %p183 = scmp.eq.s32.totalorder %s17, 0
      %p184 = por %p182, %p183
      %p185 = scmp.ne.s32.totalorder %s177, %s179
      %p186 = scmp.eq.s32.totalorder %s22, 1
      %p187 = por %p185, %p186
      %p188 = scmp.ne.s32.totalorder %s179, %s180
      %p189 = scmp.eq.s32.totalorder %s22, 0
      %p190 = por %p188, %p189
      %p191 = scmp.ne.s32.totalorder %s179, %s180
      %p192 = scmp.eq.s32.totalorder %s23, 1
      %p193 = por %p191, %p192
      %p195 = scmp.ne.s32.totalorder %s180, %s194
      %p196 = scmp.eq.s32.totalorder %s23, 0
      %p197 = por %p195, %p196
      %s198 = ssub.s32 %s24, %s36
      %p199 = scmp.eq.s32.totalorder %s198, 0
      %s201 = sadd.s32 %s200, 1
      %s202 = scalar_select %p199, %s200, %s201
      %p205 = pneg %p199
      %p206 = scmp.eq.s32.totalorder %s17, 1
      %p207 = por %p205, %p206
      %p208 = scmp.ne.s32.totalorder %s200, %s203
      %p209 = scmp.eq.s32.totalorder %s17, 0
      %p210 = por %p208, %p209
      %p211 = scmp.ne.s32.totalorder %s200, %s203
      %p212 = scmp.eq.s32.totalorder %s22, 1
      %p213 = por %p211, %p212
      %p214 = scmp.ne.s32.totalorder %s203, %s204
      %p215 = scmp.eq.s32.totalorder %s22, 0
      %p216 = por %p214, %p215
      %p217 = scmp.ne.s32.totalorder %s203, %s204
      %p218 = scmp.eq.s32.totalorder %s23, 1
      %p219 = por %p217, %p218
      %p221 = scmp.ne.s32.totalorder %s204, %s220
      %p222 = scmp.eq.s32.totalorder %s23, 0
      %p223 = por %p221, %p222
      %p224 = scmp.le.s32.totalorder 1, %s17
      %p225 = scmp.lt.s32.totalorder %s17, 3
      %p226 = pnand %p224, %p225
      %p227 = pneg %p226
      // Predicated region
      $region9: #{tpu_custom_call.1} parent=5 // pred_check
        _
      $region10: #{tpu_custom_call.1} parent=5 // pred_check_branch
        %229 = sbr.rel (%p226) target = $region12
      $region11: #{tpu_custom_call.1} parent=5 // pred_region
        %s230 = ssub.s32 %s17, 1
        // Predicated region
        $region13: #{tpu_custom_call.1} parent=11 // pred_check
          %p231 = pneg %p106
        $region14: #{tpu_custom_call.1} parent=11 // pred_check_branch
          %233 = sbr.rel (%p231) target = $region16
        $region15: #{tpu_custom_call.1} parent=11 // pred_region
          _
        $region16: #{tpu_custom_call.1} parent=11 // pred_fallthru
          _
        // Predicated region
        $region17: #{tpu_custom_call.1} parent=11 // pred_check
          %p234 = pneg %p127
        $region18: #{tpu_custom_call.1} parent=11 // pred_check_branch
          %236 = sbr.rel (%p234) target = $region20
        $region19: #{tpu_custom_call.1} parent=11 // pred_region
          _
        $region20: #{tpu_custom_call.1} parent=11 // pred_fallthru
          _
        // Predicated region
        $region21: #{tpu_custom_call.1} parent=11 // pred_check
          %p237 = pneg %p148
        $region22: #{tpu_custom_call.1} parent=11 // pred_check_branch
          %239 = sbr.rel (%p237) target = $region24
        $region23: #{tpu_custom_call.1} parent=11 // pred_region
          _
        $region24: #{tpu_custom_call.1} parent=11 // pred_fallthru
          _
        // Predicated region
        $region25: #{tpu_custom_call.1} parent=11 // pred_check
          %p240 = pneg %p169
        $region26: #{tpu_custom_call.1} parent=11 // pred_check_branch
          %242 = sbr.rel (%p240) target = $region28
        $region27: #{tpu_custom_call.1} parent=11 // pred_region
          _
        $region28: #{tpu_custom_call.1} parent=11 // pred_fallthru
          _
        // Predicated region
        $region29: #{tpu_custom_call.1} parent=11 // pred_check
          %p243 = pneg %p190
        $region30: #{tpu_custom_call.1} parent=11 // pred_check_branch
          %245 = sbr.rel (%p243) target = $region32
        $region31: #{tpu_custom_call.1} parent=11 // pred_region
          _
        $region32: #{tpu_custom_call.1} parent=11 // pred_fallthru
          _
      $region12: #{tpu_custom_call.1} parent=5 // pred_fallthru
        _
      %p246 = scmp.lt.s32.totalorder %s17, 2
      // Predicated region
      $region33: #{tpu_custom_call.1} parent=5 // pred_check
        %p247 = pneg %p246
      $region34: #{tpu_custom_call.1} parent=5 // pred_check_branch
        %249 = sbr.rel (%p247) target = $region36
      $region35: #{tpu_custom_call.1} parent=5 // pred_region
        // Predicated region
        $region37: #{tpu_custom_call.1} parent=35 // pred_check
          %p250 = pneg %p51
        $region38: #{tpu_custom_call.1} parent=35 // pred_check_branch
          %252 = sbr.rel (%p250) target = $region40
        $region39: #{tpu_custom_call.1} parent=35 // pred_region
          %s253 = smul.u32 4, %s25
          %p254 = scmp.lt.s32.totalorder %s24, 1
          %s255 = scalar_select %p254, %s24, 1
          %p256 = scmp.lt.s32.totalorder %s253, 3
          %s257 = scalar_select %p256, %s253, 3
          %s258 = smul.addr %s255, 4
          %s259 = sadd.s32 %s257, %s258
          %s260 = smul.addr %s259, 8
          %s261 = scalar_lea.vmem %s0, %s260
          %s262 = smul.u32 4, %s25
        $region40: #{tpu_custom_call.1} parent=35 // pred_fallthru
          _
        // Predicated region
        $region41: #{tpu_custom_call.1} parent=35 // pred_check
          %p263 = pneg %p79
        $region42: #{tpu_custom_call.1} parent=35 // pred_check_branch
          %265 = sbr.rel (%p263) target = $region44
        $region43: #{tpu_custom_call.1} parent=35 // pred_region
          %s266 = smul.u32 4, %s25
          %p267 = scmp.lt.s32.totalorder %s24, 1
          %s268 = scalar_select %p267, %s24, 1
          %p269 = scmp.lt.s32.totalorder %s266, 3
          %s270 = scalar_select %p269, %s266, 3
          %s271 = smul.addr %s268, 4
          %s272 = sadd.s32 %s270, %s271
          %s273 = smul.addr %s272, 8
          %s274 = scalar_lea.vmem %s1, %s273
          %s275 = smul.u32 4, %s25
        $region44: #{tpu_custom_call.1} parent=35 // pred_fallthru
          _
      $region36: #{tpu_custom_call.1} parent=5 // pred_fallthru
        _
      %p276 = scmp.le.s32.totalorder 1, %s17
      %p277 = scmp.lt.s32.totalorder %s17, 3
      %p278 = pnand %p276, %p277
      %p279 = pneg %p278
      // Predicated region
      $region45: #{tpu_custom_call.1} parent=5 // pred_check
        _
      $region46: #{tpu_custom_call.1} parent=5 // pred_check_branch
        %281 = sbr.rel (%p278) target = $region48
      $region47: #{tpu_custom_call.1} parent=5 // pred_region
        %s282 = ssub.s32 %s17, 1
        %s283 = smul.u32 4, %s27
        %p284 = scmp.lt.s32.totalorder %s26, 1
        %s285 = scalar_select %p284, %s26, 1
        %p286 = scmp.lt.s32.totalorder %s283, 3
        %s287 = scalar_select %p286, %s283, 3
        %s288 = smul.addr %s285, 4
        %s289 = sadd.s32 %s287, %s288
        %s290 = smul.addr %s289, 8
        %s291 = scalar_lea.vmem %s0, %s290
        %p292 = pneg %p57
        %p293 = pneg %p54
        %s294 = smul.u32 4, %s27
        %p295 = scmp.lt.s32.totalorder %s26, 1
        %s296 = scalar_select %p295, %s26, 1
        %p297 = scmp.lt.s32.totalorder %s294, 3
        %s298 = scalar_select %p297, %s294, 3
        %s299 = smul.addr %s296, 4
        %s300 = sadd.s32 %s298, %s299
        %s301 = smul.addr %s300, 8
        %s302 = scalar_lea.vmem %s1, %s301
        %p303 = pneg %p85
        %p304 = pneg %p82
        %p305 = pneg %p106
        %p306 = pneg %p103
        %p307 = pneg %p127
        %p308 = pneg %p124
        %p309 = pneg %p148
        %p310 = pneg %p145
        %p311 = pneg %p169
        %p312 = pneg %p166
        %p313 = pneg %p190
        %p314 = pneg %p187
        %p315 = pneg %p216
        %p316 = pneg %p213
        %s317 = sand.u32 %s203, 1
        %s318 = scalar_lea.sflag [#allocation6], %s317
        %s319 = sand.u32 %s203, 1
        %s320 = smul.addr %s319, 4
        %s321 = scalar_lea.vmem [#allocation5], %s320
        %s322 = smul.u32 4, %s27
        %p323 = scmp.lt.s32.totalorder %s26, 1
        %s324 = scalar_select %p323, %s26, 1
        %p325 = scmp.lt.s32.totalorder %s322, 3
        %s326 = scalar_select %p325, %s322, 3
        %s327 = smul.addr %s324, 4
        %s328 = sadd.s32 %s326, %s327
        %s329 = smul.addr %s328, 8
        %s330 = scalar_lea.vmem %s0, %s329
        %s331 = smul.u32 4, %s27
        %s332 = smul.u32 4, %s27
        %p333 = scmp.lt.s32.totalorder %s26, 1
        %s334 = scalar_select %p333, %s26, 1
        %p335 = scmp.lt.s32.totalorder %s332, 3
        %s336 = scalar_select %p335, %s332, 3
        %s337 = smul.addr %s334, 4
        %s338 = sadd.s32 %s336, %s337
        %s339 = smul.addr %s338, 8
        %s340 = scalar_lea.vmem %s1, %s339
        %s341 = smul.u32 4, %s27
        %p342 = scmp.eq.s32.totalorder %s27, 0
        // Predicated region
        $region49: #{tpu_custom_call.1} parent=47 // pred_check
          %p343 = pneg %p342
        $region50: #{tpu_custom_call.1} parent=47 // pred_check_branch
          %345 = sbr.rel (%p343) target = $region52
        $region51: #{tpu_custom_call.1} parent=47 // pred_region
          %vm346 = vcmask 261120
          %347 = vst.msk [vmem:[#allocation2] sm:$0xff] %vm346, 0.0
          %348 = vst.msk [vmem:[#allocation2 + $0x8] sm:$0xff] %vm346, 0.0
          %vm349 = vcmask 7168
          %350 = vst.msk [vmem:[#allocation3] sm:$0xff] %vm349, 0.0
          %351 = vst.msk [vmem:[#allocation3 + $0x8] sm:$0xff] %vm349, 0.0
        $region52: #{tpu_custom_call.1} parent=47 // pred_fallthru
          _
        %v352 = vld [vmem:[%s330] sm:$0xff]
        %v353 = vld [vmem:[%s330 + $0x8] sm:$0xff]
        %v354 = vld [vmem:[%s330 + $0x10] sm:$0xff]
        %v355 = vld [vmem:[%s330 + $0x18] sm:$0xff]
        %v356 = vld [vmem:[%s340] sm:$0xff]
        %v357 = vld [vmem:[%s340 + $0x8] sm:$0xff]
        %v358 = vld [vmem:[%s340 + $0x10] sm:$0xff]
        %v359 = vld [vmem:[%s340 + $0x18] sm:$0xff]
        %s360 = smul.u32 %s27, 8
        %vm361 = vcmp.gt.f32.partialorder %v356, 0.0
        %vm362 = vcmp.gt.f32.partialorder %v357, 0.0
        %vm363 = vcmp.gt.f32.partialorder %v358, 0.0
        %vm364 = vcmp.gt.f32.partialorder %v359, 0.0
        %v365 = vsel %vm361, 1, 0
        %v366 = vsel %vm362, 1, 0
        %v367 = vsel %vm363, 1, 0
        %v368 = vsel %vm364, 1, 0
        %369 = vset.pattern.permute.xlu0 0
        %370 = vperm.xlu0 %369, %v365
        %v371 = vpop.permute.xlu0 %370
        %372 = vset.pattern.permute.xlu0 0
        %373 = vperm.xlu0 %372, %v366
        %v374 = vpop.permute.xlu0 %373
        %375 = vset.pattern.permute.xlu0 0
        %376 = vperm.xlu0 %375, %v367
        %v377 = vpop.permute.xlu0 %376
        %378 = vset.pattern.permute.xlu0 0
        %379 = vperm.xlu0 %378, %v368
        %v380 = vpop.permute.xlu0 %379
        %vm381 = vcmp.eq.s32.totalorder %v371, 1
        %vm382 = vcmp.eq.s32.totalorder %v374, 1
        %vm383 = vcmp.eq.s32.totalorder %v377, 1
        %vm384 = vcmp.eq.s32.totalorder %v380, 1
        %v385 = vsel %vm381, %v352, -inf
        %v386 = vsel %vm382, %v353, -inf
        %v387 = vsel %vm383, %v354, -inf
        %v388 = vsel %vm384, %v355, -inf
        %v393 = vrot.slane %v385, 4
        %v394 = vrot.slane %v386, 4
        %v395 = vrot.slane %v387, 4
        %v396 = vrot.slane %v388, 4
        %vm401 = vcmask 257024
        %v402 = vsel %vm401, %v385, -inf
        %v403 = vrot.slane %v402, 4
        %v404 = vmax.f32 %v402, %v403
        %v405 = vrot.slane %v404, 2
        %v406 = vmax.f32 %v404, %v405
        %v407 = vrot.slane %v406, 1
        %v408 = vmax.f32 %v406, %v407
        %v409 = vsel %vm401, %v393, -inf
        %v410 = vrot.slane %v409, 4
        %v411 = vmax.f32 %v409, %v410
        %v412 = vrot.slane %v411, 2
        %v413 = vmax.f32 %v411, %v412
        %v414 = vrot.slane %v413, 1
        %v415 = vmax.f32 %v413, %v414
        %v416 = vsel %vm401, %v386, -inf
        %v417 = vrot.slane %v416, 4
        %v418 = vmax.f32 %v416, %v417
        %v419 = vrot.slane %v418, 2
        %v420 = vmax.f32 %v418, %v419
        %v421 = vrot.slane %v420, 1
        %v422 = vmax.f32 %v420, %v421
        %v423 = vsel %vm401, %v394, -inf
        %v424 = vrot.slane %v423, 4
        %v425 = vmax.f32 %v423, %v424
        %v426 = vrot.slane %v425, 2
        %v427 = vmax.f32 %v425, %v426
        %v428 = vrot.slane %v427, 1
        %v429 = vmax.f32 %v427, %v428
        %v430 = vsel %vm401, %v387, -inf
        %v431 = vrot.slane %v430, 4
        %v432 = vmax.f32 %v430, %v431
        %v433 = vrot.slane %v432, 2
        %v434 = vmax.f32 %v432, %v433
        %v435 = vrot.slane %v434, 1
        %v436 = vmax.f32 %v434, %v435
        %v437 = vsel %vm401, %v395, -inf
        %v438 = vrot.slane %v437, 4
        %v439 = vmax.f32 %v437, %v438
        %v440 = vrot.slane %v439, 2
        %v441 = vmax.f32 %v439, %v440
        %v442 = vrot.slane %v441, 1
        %v443 = vmax.f32 %v441, %v442
        %v444 = vsel %vm401, %v388, -inf
        %v445 = vrot.slane %v444, 4
        %v446 = vmax.f32 %v444, %v445
        %v447 = vrot.slane %v446, 2
        %v448 = vmax.f32 %v446, %v447
        %v449 = vrot.slane %v448, 1
        %v450 = vmax.f32 %v448, %v449
        %v451 = vsel %vm401, %v396, -inf
        %v452 = vrot.slane %v451, 4
        %v453 = vmax.f32 %v451, %v452
        %v454 = vrot.slane %v453, 2
        %v455 = vmax.f32 %v453, %v454
        %v456 = vrot.slane %v455, 1
        %v457 = vmax.f32 %v455, %v456
        %vm466 = vcmask 1041409
        %v467 = vsel %vm466, %v415, %v408
        %vm468 = vcmask 1042434
        %v469 = vsel %vm468, %v422, %v467
        %vm470 = vcmask 1043459
        %v471 = vsel %vm470, %v429, %v469
        %vm472 = vcmask 1044484
        %v473 = vsel %vm472, %v436, %v471
        %vm474 = vcmask 1045509
        %v475 = vsel %vm474, %v443, %v473
        %vm476 = vcmask 1046534
        %v477 = vsel %vm476, %v450, %v475
        %vm478 = vcmask 1047559
        %v479 = vsel %vm478, %v457, %v477
        %s481 = scalar_lea.vmem [#allocation2], %s360
        %vm482 = vcmask 261120
        %483 = vst.msk [vmem:[%s481] sm:$0xff] %vm482, %v479
        // Predicated region
        $region53: #{tpu_custom_call.1} parent=47 // pred_check
          %p484 = pneg %p342
        $region54: #{tpu_custom_call.1} parent=47 // pred_check_branch
          %486 = sbr.rel (%p484) target = $region56
        $region55: #{tpu_custom_call.1} parent=47 // pred_region
          %v487 = vld [vmem:[#allocation2] sm:$0xff]
          %v488 = vld [vmem:[#allocation2 + $0x8] sm:$0xff]
          %vm491 = vcmask 1046528
          %v492 = vrot.slane %v487, 1
          %v493 = vrot.slane %v488, 1
          %v494 = vsel %vm491, %v492, %v493
          %v496 = vmax.f32 %v487, %v494
          %v497 = vld [vmem:[%s2] sm:$0xff]
          %v498 = vld [vmem:[%s2 + $0x8] sm:$0xff]
          %v499 = vld [vmem:[%s2 + $0x10] sm:$0xff]
          %v500 = vld [vmem:[%s2 + $0x18] sm:$0xff]
          %v501 = vld [vmem:[%s3] sm:$0x1]
          %v503 = vperm.slane %v501, 0
          %v506 = vsel %vm482, %v496, 0
          %508 = vmatpush.msra.mxu0 0.0
          %509 = vmatpush.msra.mxu0 0.0
          %510 = vmatpush.msra.mxu0 0.0
          %511 = vmatpush.msra.mxu0 0.0
          %512 = vmatpush.msra.mxu0 0.0
          %513 = vmatpush.msra.mxu0 0.0
          %514 = vmatpush.msra.mxu0 0.0
          %515 = vmatpush.msra.mxu0 0.0
          %516 = vmatpush.msra.mxu0 0.0
          %517 = vmatpush.msra.mxu0 0.0
          %518 = vmatpush.msra.mxu0 0.0
          %519 = vmatpush.msra.mxu0 0.0
          %520 = vmatpush.msra.mxu0 %v500
          %521 = vmatpush.msra.mxu0 %v499
          %522 = vmatpush.msra.mxu0 %v498
          %523 = vmatpush.msra.mxu0 %v497
          %524 = vmatmul.f32.gmra.mxu0 %v506
          %v525 = vpop.f32.mrf.mxu0
          %v526 = vadd.f32 %v503, %v525
          %527 = vdwg.mxu0
          %v528 = vmax.f32 %v526, 0.0
          %v529 = vld [vmem:[%s4] sm:$0x1]
          %v531 = vperm.slane %v529, 0
          %v533 = vmul.f32 %v528, %v531
          %vm534 = vcmask 130048
          %v535 = vsel %vm534, %v533, 0.0
          %536 = vadd.xlane.f32.xlu0 %v535
          %v537 = vpop.xlane.xlu0 %536
          %s538 = sld [smem:[#allocation4]]
          %v539 = vstv %s538
          %v540 = vadd.f32 %v537, %v539
          %v541 = vlaneseq
          %v542 = vshrl.u32 %v541, 7
          %vm543 = vcmp.lt.s32.totalorder %v542, 7
          %v544 = vsel %vm543, %v540, -inf
          %v545 = vrot.slane %v544, 4
          %v546 = vmax.f32 %v544, %v545
          %v547 = vrot.slane %v546, 2
          %v548 = vmax.f32 %v546, %v547
          %v549 = vrot.slane %v548, 1
          %v550 = vmax.f32 %v548, %v549
          %v551 = vsub.f32 %v544, %v550
          %v552 = vmul.f32 %v551, 1.442695
          %v553 = vpow.pop %v552
          %v554 = vrot.slane %v553, 4
          %v555 = vadd.f32 %v553, %v554
          %v556 = vrot.slane %v555, 2
          %v557 = vadd.f32 %v555, %v556
          %v558 = vrot.slane %v557, 1
          %v559 = vadd.f32 %v557, %v558
          %v560 = vrcp.pop %v559
          %v561 = vmul.f32 %v559, %v560
          %v562 = vsub.f32 1.0, %v561
          %v563 = vmul.f32 %v560, %v562
          %v564 = vadd.f32 %v560, %v563
          %vm565 = vweird.f32 %v559
          %vm566 = vweird.f32 %v560
          %vm567 = vmor %vm565, %vm566
          %v568 = vsel %vm567, %v560, %v564
          %v569 = vand.u32 2147483647, %v559
          %vm570 = vcmp.eq.f32.partialorder %v569, 8.507059e+37
          %v571 = vand.u32 %v559, 2147483648
          %v572 = vor.u32 1.1754944e-38, %v571
          %v573 = vsel %vm570, %v572, %v568
          %v574 = vmul.f32 %v553, %v573
          %v575 = vmul.f32 %v496, %v574
          %v576 = vld [vmem:[%s6] sm:$0xf]
          %vm577 = vcmask 64512
          %v579 = vsel %vm577, %v576, 0
          %581 = vmatpush.msra.mxu0 0.0
          %582 = vmatpush.msra.mxu0 0.0
          %583 = vmatpush.msra.mxu0 0.0
          %584 = vmatpush.msra.mxu0 0.0
          %585 = vmatpush.msra.mxu0 0.0
          %586 = vmatpush.msra.mxu0 0.0
          %587 = vmatpush.msra.mxu0 0.0
          %588 = vmatpush.msra.mxu0 0.0
          %589 = vmatpush.msra.mxu0 0.0
          %590 = vmatpush.msra.mxu0 0.0
          %591 = vmatpush.msra.mxu0 0.0
          %592 = vmatpush.msra.mxu0 0.0
          %593 = vmatpush.msra.mxu0 0.0
          %594 = vmatpush.msra.mxu0 0.0
          %595 = vmatpush.msra.mxu0 0.0
          %596 = vmatpush.msra.mxu0 %v575
          %597 = vmatmul.f32.gmra.mxu0 %v579
          %v598 = vpop.f32.mrf.mxu0
          %v599 = vadd.f32 0.0, %v598
          %600 = vdwg.mxu0
          %601 = vst.msk [vmem:[%s321] sm:$0xf] %vm401, %v599
        $region56: #{tpu_custom_call.1} parent=47 // pred_fallthru
          _
        %s602 = sand.u32 %s203, 1
        %s603 = scalar_lea.sflag [#allocation6], %s602
        %s604 = sand.u32 %s203, 1
        %s605 = smul.addr %s604, 4
        %s606 = scalar_lea.vmem [#allocation5], %s605
        // Predicated region
        $region57: #{tpu_custom_call.1} parent=47 // pred_check
          %p607 = pneg %p213
        $region58: #{tpu_custom_call.1} parent=47 // pred_check_branch
          %609 = sbr.rel (%p607) target = $region60
        $region59: #{tpu_custom_call.1} parent=47 // pred_region
          %611 = vsyncadd %s603, 0
          %s612 = smul.addr %s26, 4
          %s613 = scalar_lea.hbm %s7, %s612
          %s615 = sshll.u32 %s606, 4
          %s616 = int_to_ptr.vmem [resolvable:$true] %s615
          %s617 = sshll.u32 %s613, 4
          %s618 = int_to_ptr.hbm [resolvable:$true] %s617
          %620 = dma.vmem_to_hbm [thread:$0]  %s616, 64, %s618, %s603
        $region60: #{tpu_custom_call.1} parent=47 // pred_fallthru
          _
      $region48: #{tpu_custom_call.1} parent=5 // pred_fallthru
        _
      %p621 = scmp.le.s32.totalorder 2, %s17
      // Predicated region
      $region61: #{tpu_custom_call.1} parent=5 // pred_check
        %p622 = pneg %p621
      $region62: #{tpu_custom_call.1} parent=5 // pred_check_branch
        %624 = sbr.rel (%p622) target = $region64
      $region63: #{tpu_custom_call.1} parent=5 // pred_region
        %s625 = ssub.s32 %s17, 2
        // Predicated region
        $region65: #{tpu_custom_call.1} parent=63 // pred_check
          %p626 = pneg %p219
        $region66: #{tpu_custom_call.1} parent=63 // pred_check_branch
          %628 = sbr.rel (%p626) target = $region68
        $region67: #{tpu_custom_call.1} parent=63 // pred_region
          %s629 = sand.u32 %s204, 1
          %s630 = scalar_lea.sflag [#allocation6], %s629
          %s631 = sand.u32 %s204, 1
          %s632 = smul.addr %s631, 4
          %s633 = scalar_lea.vmem [#allocation5], %s632
          %635 = dma.done %s630, 64
        $region68: #{tpu_custom_call.1} parent=63 // pred_fallthru
          _
      $region64: #{tpu_custom_call.1} parent=5 // pred_fallthru
        _
    $region6: #{tpu_custom_call.1} parent=1 // loop_footer
      %s21 = sadd.s32 1, %s17
    $region7: #{tpu_custom_call.1} parent=1 // loop_footer_branch
      %16 = sbr.rel target = $region3
    $region8: #{tpu_custom_call.1} parent=1 // loop_exit
      _
    %636 = vsyncpa [#allocation6], 1
    %s637 = scalar_lea.sflag [#allocation6], 1
    %638 = vsyncpa %s637, 1

</llo_original>
